<compile_context>
chip_gen: v6e
topology: v6e:2x2x1
jax: 0.10.0
libtpu: 0.0.40
codegen_flags: <defaults>
</compile_context>

<pallas_src>
import jax
import jax.numpy as jnp
from jax.experimental import pallas as pl
from jax.experimental.pallas import tpu as pltpu


def _round_up(x, m):
    return ((x + m - 1) // m) * m


def mlp2_kernel(ef_ref, p_ref, w1_ref, w2_ref, b2_ref, o_ref):
    # ef_ref: [TB, 2]   (col 0 = E, col 1 = F)
    # p_ref : [4, 128]  row0=[wE|0], row1=[0|wF], row2=[bE|bF], row3=[b1|0]
    # w1_ref: [128, 64] (stored [in, out])
    # w2_ref: [64, Np]  (out padded to a multiple of 128 lanes)
    # b2_ref: [1, Np]
    # o_ref : [TB, Np]
    p = p_ref[...]                       # [4, 128]
    wE_pad = p[0:1, :]                   # [1, 128]
    wF_pad = p[1:2, :]                   # [1, 128]
    b_ef = p[2:3, :]                     # [1, 128]
    b1 = p[3:4, :64]                     # [1, 64]

    e = ef_ref[:, 0:1]                   # [TB, 1]
    f = ef_ref[:, 1:2]                   # [TB, 1]

    # Fused fc_E1/fc_F1 + ReLU on the VPU. Because wE_pad is zero in the upper
    # 64 lanes and wF_pad is zero in the lower 64, this equals
    # concat(relu(E@wE+bE), relu(F@wF+bF)) laid out lane-dense in [TB, 128].
    x = jnp.maximum(e * wE_pad + f * wF_pad + b_ef, 0.0)            # [TB, 128]

    # fc1 as one K=128 MXU matmul, then ReLU.
    h = jnp.dot(x, w1_ref[...], preferred_element_type=jnp.float32) + b1
    h = jnp.maximum(h, 0.0)                                          # [TB, 64]

    # fc2 (output lane-padded to Np, no masking on the store).
    o_ref[...] = (jnp.dot(h, w2_ref[...], preferred_element_type=jnp.float32)
                  + b2_ref[...])


def pack_params(params, out_dim):
    """Pack the 8 raw parameter tensors into 4 lane-friendly arrays."""
    wE, bE, wF, bF, w1, b1, w2, b2 = params
    z64 = jnp.zeros((64,), jnp.float32)
    p128 = jnp.stack(
        [
            jnp.concatenate([wE.reshape(64), z64]),   # [wE | 0]
            jnp.concatenate([z64, wF.reshape(64)]),   # [0  | wF]
            jnp.concatenate([bE, bF]),                # [bE | bF]
            jnp.concatenate([b1, z64]),               # [b1 | 0]
        ],
        axis=0,
    ).astype(jnp.float32)                             # [4, 128]

    n_pad = _round_up(out_dim, 128)
    w2p = jnp.pad(w2.astype(jnp.float32), ((0, 0), (0, n_pad - out_dim)))   # [64, Np]
    b2p = jnp.pad(b2.astype(jnp.float32).reshape(1, -1),
                  ((0, 0), (0, n_pad - out_dim)))                            # [1, Np]
    return p128, w1.astype(jnp.float32), w2p, b2p, n_pad


def mlp2_forward(A, B, C, D, E, F, G, H, I, params):
    """Pallas implementation of MLPModel2.forward. Only E and F are used."""
    wE, bE, wF, bF, w1, b1, w2, b2 = params
    batch = E.shape[0]
    out_dim = w2.shape[1]

    p128, w1f, w2p, b2p, n_pad = pack_params(params, out_dim)

    # Pack E,F into one [B, 2] input and pad batch to the tile size.
    ef = jnp.concatenate([E.astype(jnp.float32), F.astype(jnp.float32)], axis=1)
    bp8 = _round_up(batch, 8)
    tb = min(bp8, 512)                    # small per-step tile; safe for 32 MiB VMEM
    bp = _round_up(batch, tb)
    ef_p = jnp.pad(ef, ((0, bp - batch), (0, 0)))     # [bp, 2]

    grid = (bp // tb,)

    cost = pl.CostEstimate(
        flops=2 * bp * 128 * 64 + 2 * bp * 64 * n_pad + 4 * bp * 128,
        transcendentals=0,
        bytes_accessed=4 * (bp * 2 + 4 * 128 + 128 * 64 + 64 * n_pad
                            + n_pad + bp * n_pad),
    )

    out_padded = pl.pallas_call(
        mlp2_kernel,
        out_shape=jax.ShapeDtypeStruct((bp, n_pad), jnp.float32),
        grid=grid,
        in_specs=[
            pl.BlockSpec((tb, 2), lambda i: (i, 0)),        # E|F activations
            pl.BlockSpec((4, 128), lambda i: (0, 0)),       # packed small params
            pl.BlockSpec((128, 64), lambda i: (0, 0)),      # w1 (resident)
            pl.BlockSpec((64, n_pad), lambda i: (0, 0)),    # w2 padded (resident)
            pl.BlockSpec((1, n_pad), lambda i: (0, 0)),     # b2 padded (resident)
        ],
        out_specs=pl.BlockSpec((tb, n_pad), lambda i: (i, 0)),
        compiler_params=pltpu.CompilerParams(
            dimension_semantics=("parallel",)),
        cost_estimate=cost,
    )(ef_p, p128, w1f, w2p, b2p)

    return out_padded[:batch, :out_dim]


def init_params(key, output_dim):
    """Deterministic parameter init. Weights stored as [in, out]."""
    ks = jax.random.split(key, 8)
    wE = jax.random.normal(ks[0], (1, 64), jnp.float32) * 0.5
    bE = jax.random.normal(ks[1], (64,), jnp.float32) * 0.1
    wF = jax.random.normal(ks[2], (1, 64), jnp.float32) * 0.5
    bF = jax.random.normal(ks[3], (64,), jnp.float32) * 0.1
    w1 = jax.random.normal(ks[4], (128, 64), jnp.float32) * 0.1
    b1 = jax.random.normal(ks[5], (64,), jnp.float32) * 0.1
    w2 = jax.random.normal(ks[6], (64, output_dim), jnp.float32) * 0.1
    b2 = jax.random.normal(ks[7], (output_dim,), jnp.float32) * 0.1
    return (wE, bE, wF, bF, w1, b1, w2, b2)


def reference_forward(E, F, params):
    """Pure-JAX reference mirroring the PyTorch forward."""
    wE, bE, wF, bF, w1, b1, w2, b2 = params
    x_e = jnp.maximum(E @ wE + bE, 0.0)
    x_f = jnp.maximum(F @ wF + bF, 0.0)
    x = jnp.concatenate([x_e, x_f], axis=1)
    h = jnp.maximum(x @ w1 + b1, 0.0)
    return h @ w2 + b2


if __name__ == "__main__":
    key = jax.random.PRNGKey(0)
    k_par, k_in = jax.random.split(key)

    batch = 8
    output_dim = 16
    params = init_params(k_par, output_dim)

    # Nine inputs as in the PyTorch signature; only E and F matter.
    kA, kB, kC, kD, kE, kF, kG, kH, kI = jax.random.split(k_in, 9)
    A = jax.random.normal(kA, (batch, 1), jnp.float32)
    B = jax.random.normal(kB, (batch, 1), jnp.float32)
    C = jax.random.normal(kC, (batch, 1), jnp.float32)
    D = jax.random.normal(kD, (batch, 1), jnp.float32)
    E = jax.random.normal(kE, (batch, 1), jnp.float32)
    F = jax.random.normal(kF, (batch, 1), jnp.float32)
    G = jax.random.normal(kG, (batch, 1), jnp.float32)
    H = jax.random.normal(kH, (batch, 1), jnp.float32)
    I = jax.random.normal(kI, (batch, 1), jnp.float32)

    out = mlp2_forward(A, B, C, D, E, F, G, H, I, params)
    out = jax.block_until_ready(out)

    ref = reference_forward(E, F, params)
    assert out.shape == (batch, output_dim)
    assert jnp.allclose(out, ref, atol=1e-4, rtol=1e-4), "mismatch vs reference"

    print("KERNEL_OK")
</pallas_src>

<mosaic_0001>
module attributes {stable_mosaic.version = 11 : i64} {
  func.func @mlp2_kernel(%arg0: i32, %arg1: memref<8x2xf32, #tpu.memory_space<vmem>>, %arg2: memref<4x128xf32, #tpu.memory_space<vmem>>, %arg3: memref<128x64xf32, #tpu.memory_space<vmem>>, %arg4: memref<64x128xf32, #tpu.memory_space<vmem>>, %arg5: memref<1x128xf32, #tpu.memory_space<vmem>>, %arg6: memref<8x128xf32, #tpu.memory_space<vmem>>) attributes {dimension_semantics = [#tpu.dimension_semantics<parallel>], iteration_bounds = array<i64: 1>, scalar_prefetch = 0 : i64, scratch_operands = 0 : i64, tpu.core_type = #tpu.core_type<tc>, window_params = [{transform_indices = @transform_0, window_bounds = array<i64: 8, 2>}, {pipeline_mode = #tpu.pipeline_mode<synchronous>, transform_indices = @transform_1, window_bounds = array<i64: 4, 128>}, {pipeline_mode = #tpu.pipeline_mode<synchronous>, transform_indices = @transform_2, window_bounds = array<i64: 128, 64>}, {pipeline_mode = #tpu.pipeline_mode<synchronous>, transform_indices = @transform_3, window_bounds = array<i64: 64, 128>}, {pipeline_mode = #tpu.pipeline_mode<synchronous>, transform_indices = @transform_4, window_bounds = array<i64: 1, 128>}, {transform_indices = @transform_5, window_bounds = array<i64: 8, 128>}]} {
    %c0 = arith.constant 0 : index
    %c0_0 = arith.constant 0 : index
    %0 = vector.load %arg2[%c0, %c0_0] : memref<4x128xf32, #tpu.memory_space<vmem>>, vector<4x128xf32>
    %1 = vector.extract_strided_slice %0 {offsets = [0, 0], sizes = [1, 128], strides = [1, 1]} : vector<4x128xf32> to vector<1x128xf32>
    %2 = vector.extract_strided_slice %0 {offsets = [1, 0], sizes = [1, 128], strides = [1, 1]} : vector<4x128xf32> to vector<1x128xf32>
    %3 = vector.extract_strided_slice %0 {offsets = [2, 0], sizes = [1, 128], strides = [1, 1]} : vector<4x128xf32> to vector<1x128xf32>
    %4 = vector.extract_strided_slice %0 {offsets = [3, 0], sizes = [1, 64], strides = [1, 1]} : vector<4x128xf32> to vector<1x64xf32>
    %c0_1 = arith.constant 0 : index
    %c0_2 = arith.constant 0 : index
    %5 = vector.load %arg1[%c0_1, %c0_2] : memref<8x2xf32, #tpu.memory_space<vmem>>, vector<8x1xf32>
    %c0_3 = arith.constant 0 : index
    %c1 = arith.constant 1 : index
    %6 = vector.load %arg1[%c0_3, %c1] : memref<8x2xf32, #tpu.memory_space<vmem>>, vector<8x1xf32>
    %7 = vector.broadcast %5 : vector<8x1xf32> to vector<8x128xf32>
    %8 = vector.broadcast %1 : vector<1x128xf32> to vector<8x128xf32>
    %9 = arith.mulf %7, %8 : vector<8x128xf32>
    %10 = vector.broadcast %6 : vector<8x1xf32> to vector<8x128xf32>
    %11 = vector.broadcast %2 : vector<1x128xf32> to vector<8x128xf32>
    %12 = arith.mulf %10, %11 : vector<8x128xf32>
    %13 = arith.addf %9, %12 : vector<8x128xf32>
    %14 = vector.broadcast %3 : vector<1x128xf32> to vector<8x128xf32>
    %15 = arith.addf %13, %14 : vector<8x128xf32>
    %cst = arith.constant 0.000000e+00 : f32
    %16 = vector.broadcast %cst : f32 to vector<8x128xf32>
    %17 = arith.maximumf %15, %16 : vector<8x128xf32>
    %c0_4 = arith.constant 0 : index
    %c0_5 = arith.constant 0 : index
    %18 = vector.load %arg3[%c0_4, %c0_5] : memref<128x64xf32, #tpu.memory_space<vmem>>, vector<128x64xf32>
    %cst_6 = arith.constant dense<0.000000e+00> : vector<8x64xf32>
    %19 = tpu.matmul %17, %18, %cst_6 {dimension_numbers = #tpu.dot_dimension_numbers<[1], [0], [0], [1], [0, 0, 1, 1], [], []>} : vector<8x128xf32>, vector<128x64xf32>, vector<8x64xf32> -> vector<8x64xf32>
    %20 = vector.broadcast %4 : vector<1x64xf32> to vector<8x64xf32>
    %21 = arith.addf %19, %20 : vector<8x64xf32>
    %cst_7 = arith.constant 0.000000e+00 : f32
    %22 = vector.broadcast %cst_7 : f32 to vector<8x64xf32>
    %23 = arith.maximumf %21, %22 : vector<8x64xf32>
    %c0_8 = arith.constant 0 : index
    %c0_9 = arith.constant 0 : index
    %24 = vector.load %arg4[%c0_8, %c0_9] : memref<64x128xf32, #tpu.memory_space<vmem>>, vector<64x128xf32>
    %cst_10 = arith.constant dense<0.000000e+00> : vector<8x128xf32>
    %25 = tpu.matmul %23, %24, %cst_10 {dimension_numbers = #tpu.dot_dimension_numbers<[1], [0], [0], [1], [0, 0, 1, 1], [], []>} : vector<8x64xf32>, vector<64x128xf32>, vector<8x128xf32> -> vector<8x128xf32>
    %c0_11 = arith.constant 0 : index
    %c0_12 = arith.constant 0 : index
    %26 = vector.load %arg5[%c0_11, %c0_12] : memref<1x128xf32, #tpu.memory_space<vmem>>, vector<1x128xf32>
    %27 = vector.broadcast %26 : vector<1x128xf32> to vector<8x128xf32>
    %28 = arith.addf %25, %27 : vector<8x128xf32>
    %c0_13 = arith.constant 0 : index
    %c0_14 = arith.constant 0 : index
    %29 = vector.load %arg6[%c0_13, %c0_14] : memref<8x128xf32, #tpu.memory_space<vmem>>, vector<8x128xf32>
    tpu.vector_store %arg6[%c0_13, %c0_14], %28 {strides = array<i32>} : memref<8x128xf32, #tpu.memory_space<vmem>>, vector<8x128xf32>,
    return
  }
  func.func @transform_0(%arg0: i32) -> (i32, i32) {
    %c0_i32 = arith.constant 0 : i32
    %c0_i32_0 = arith.constant 0 : i32
    return %arg0, %c0_i32 : i32, i32
  }
  func.func @transform_1(%arg0: i32) -> (i32, i32) {
    %c0_i32 = arith.constant 0 : i32
    %c0_i32_0 = arith.constant 0 : i32
    %c0_i32_1 = arith.constant 0 : i32
    return %c0_i32, %c0_i32_0 : i32, i32
  }
  func.func @transform_2(%arg0: i32) -> (i32, i32) {
    %c0_i32 = arith.constant 0 : i32
    %c0_i32_0 = arith.constant 0 : i32
    %c0_i32_1 = arith.constant 0 : i32
    return %c0_i32, %c0_i32_0 : i32, i32
  }
  func.func @transform_3(%arg0: i32) -> (i32, i32) {
    %c0_i32 = arith.constant 0 : i32
    %c0_i32_0 = arith.constant 0 : i32
    %c0_i32_1 = arith.constant 0 : i32
    return %c0_i32, %c0_i32_0 : i32, i32
  }
  func.func @transform_4(%arg0: i32) -> (i32, i32) {
    %c0_i32 = arith.constant 0 : i32
    %c0_i32_0 = arith.constant 0 : i32
    %c0_i32_1 = arith.constant 0 : i32
    return %c0_i32, %c0_i32_0 : i32, i32
  }
  func.func @transform_5(%arg0: i32) -> (i32, i32) {
    %c0_i32 = arith.constant 0 : i32
    %c0_i32_0 = arith.constant 0 : i32
    return %arg0, %c0_i32 : i32, i32
  }
}

</mosaic_0001>

<llo_original>
// kernel: tpu_custom_call.1
$region0: #{tpu_custom_call.1}
  #allocation0 [shape = 'u32[]', space=smem, size = 0x4, offset = 0x4, fixed_abs, tag = 'smem constant byte address 0x4 - core index']
  #allocation1 [shape = 'u32[144,128]{1,0:T(1,128)}', space=vmem, size = 0x12000, scoped, tag = 'internal scratch']
  %s0 = inlined_call_operand.vmem [shape: f32[8,2], index: 0, kind: input, shape index: {}]
  %s1 = inlined_call_operand.vmem [shape: f32[4,128], index: 1, kind: input, shape index: {}]
  %s2 = inlined_call_operand.vmem [shape: f32[128,64], index: 2, kind: input, shape index: {}]
  %s3 = inlined_call_operand.vmem [shape: f32[64,128], index: 3, kind: input, shape index: {}]
  %s4 = inlined_call_operand.vmem [shape: f32[1,128], index: 4, kind: input, shape index: {}]
  %s5 = inlined_call_operand.hbm [shape: f32[8,128], index: 5, kind: output, shape index: {}]
  %s6 = sld [smem:[#allocation0]]
  $region30: #{tpu_custom_call.1} parent=0
    _
  %s8 = ssub.s32 1, %s6
  %s9 = scalar_select 0, %s8, %s6
  $region1: #{tpu_custom_call.1} parent=0
    #allocation2 [shape = 'u8[4096]{0}', space=vmem, size = 0x1000, scoped, tag = 'output window, operand 0, single buffered']
    #allocation3 [shape = 's32[1]{0}', space=sflag, size = 0x4, scoped, tag = 'scoped memory for tpu_custom_call.1']
    %10 = vsyncpa [#allocation3], 0
    // Predicated region
    $region2: #{tpu_custom_call.1} parent=1 // pred_check
      _
    $region3: #{tpu_custom_call.1} parent=1 // pred_check_branch
      %12 = sbr.rel (0) target = $region5
    $region4: #{tpu_custom_call.1} parent=1 // pred_region
      _
    $region5: #{tpu_custom_call.1} parent=1 // pred_fallthru
      _
    // Predicated region
    $region6: #{tpu_custom_call.1} parent=1 // pred_check
      _
    $region7: #{tpu_custom_call.1} parent=1 // pred_check_branch
      %14 = sbr.rel (0) target = $region9
    $region8: #{tpu_custom_call.1} parent=1 // pred_region
      _
    $region9: #{tpu_custom_call.1} parent=1 // pred_fallthru
      _
    // Predicated region
    $region10: #{tpu_custom_call.1} parent=1 // pred_check
      _
    $region11: #{tpu_custom_call.1} parent=1 // pred_check_branch
      %16 = sbr.rel (0) target = $region13
    $region12: #{tpu_custom_call.1} parent=1 // pred_region
      _
    $region13: #{tpu_custom_call.1} parent=1 // pred_fallthru
      _
    // Predicated region
    $region14: #{tpu_custom_call.1} parent=1 // pred_check
      _
    $region15: #{tpu_custom_call.1} parent=1 // pred_check_branch
      %18 = sbr.rel (0) target = $region17
    $region16: #{tpu_custom_call.1} parent=1 // pred_region
      _
    $region17: #{tpu_custom_call.1} parent=1 // pred_fallthru
      _
    // Predicated region
    $region18: #{tpu_custom_call.1} parent=1 // pred_check
      _
    $region19: #{tpu_custom_call.1} parent=1 // pred_check_branch
      %20 = sbr.rel (0) target = $region21
    $region20: #{tpu_custom_call.1} parent=1 // pred_region
      _
    $region21: #{tpu_custom_call.1} parent=1 // pred_fallthru
      _
    %v21 = vld [vmem:[%s1] sm:$0xf]
    %v22 = vld [vmem:[%s0] sm:$0xff]
    %24 = vset.pattern.permute.xlu0 0
    %25 = vperm.xlu0 %24, %v22
    %v26 = vpop.permute.xlu0 %25
    %v28 = vlaneseq
    %v29 = vshrl.u32 %v28, 7
    %v30 = vsub.s32 0, %v29
    %v31 = vrot.slane %v21, %v30
    %v32 = vmul.f32 %v26, %v31
    %33 = vset.pattern.permute.xlu0 1
    %34 = vperm.xlu0 %33, %v22
    %v35 = vpop.permute.xlu0 %34
    %v37 = vlaneseq
    %v38 = vshrl.u32 %v37, 7
    %v39 = vsub.s32 1, %v38
    %v40 = vrot.slane %v21, %v39
    %v41 = vmul.f32 %v35, %v40
    %v42 = vadd.f32 %v32, %v41
    %v43 = vlaneseq
    %v44 = vshrl.u32 %v43, 7
    %v45 = vsub.s32 2, %v44
    %v46 = vrot.slane %v21, %v45
    %v47 = vadd.f32 %v42, %v46
    %v48 = vmax.f32 %v47, 0.0
    %v49 = vld [vmem:[%s2] sm:$0xff]
    %v50 = vld [vmem:[%s2 + $0x8] sm:$0xff]
    %v51 = vld [vmem:[%s2 + $0x10] sm:$0xff]
    %v52 = vld [vmem:[%s2 + $0x18] sm:$0xff]
    %v53 = vld [vmem:[%s2 + $0x20] sm:$0xff]
    %v54 = vld [vmem:[%s2 + $0x28] sm:$0xff]
    %v55 = vld [vmem:[%s2 + $0x30] sm:$0xff]
    %v56 = vld [vmem:[%s2 + $0x38] sm:$0xff]
    %v57 = vld [vmem:[%s2 + $0x40] sm:$0xff]
    %v58 = vld [vmem:[%s2 + $0x48] sm:$0xff]
    %v59 = vld [vmem:[%s2 + $0x50] sm:$0xff]
    %v60 = vld [vmem:[%s2 + $0x58] sm:$0xff]
    %v61 = vld [vmem:[%s2 + $0x60] sm:$0xff]
    %v62 = vld [vmem:[%s2 + $0x68] sm:$0xff]
    %v63 = vld [vmem:[%s2 + $0x70] sm:$0xff]
    %v64 = vld [vmem:[%s2 + $0x78] sm:$0xff]
    %v65 = vlaneseq
    %v66 = vshrl.u32 %v65, 7
    %v67 = vsub.s32 3, %v66
    %v68 = vrot.slane %v21, %v67
    %69 = vmatprep.subr.mxu0 0.0
    %70 = vmatpush1.msra.mxu0 %v64
    %71 = vmatprep.subr.mxu0 0.0
    %72 = vmatpush1.msra.mxu0 %v63
    %73 = vmatprep.subr.mxu0 0.0
    %74 = vmatpush1.msra.mxu0 %v62
    %75 = vmatprep.subr.mxu0 0.0
    %76 = vmatpush1.msra.mxu0 %v61
    %77 = vmatprep.subr.mxu0 0.0
    %78 = vmatpush1.msra.mxu0 %v60
    %79 = vmatprep.subr.mxu0 0.0
    %80 = vmatpush1.msra.mxu0 %v59
    %81 = vmatprep.subr.mxu0 0.0
    %82 = vmatpush1.msra.mxu0 %v58
    %83 = vmatprep.subr.mxu0 0.0
    %84 = vmatpush1.msra.mxu0 %v57
    %85 = vmatprep.subr.mxu0 0.0
    %86 = vmatpush1.msra.mxu0 %v56
    %87 = vmatprep.subr.mxu0 0.0
    %88 = vmatpush1.msra.mxu0 %v55
    %89 = vmatprep.subr.mxu0 0.0
    %90 = vmatpush1.msra.mxu0 %v54
    %91 = vmatprep.subr.mxu0 0.0
    %92 = vmatpush1.msra.mxu0 %v53
    %93 = vmatprep.subr.mxu0 0.0
    %94 = vmatpush1.msra.mxu0 %v52
    %95 = vmatprep.subr.mxu0 0.0
    %96 = vmatpush1.msra.mxu0 %v51
    %97 = vmatprep.subr.mxu0 0.0
    %98 = vmatpush1.msra.mxu0 %v50
    %99 = vmatprep.subr.mxu0 0.0
    %100 = vmatpush1.msra.mxu0 %v49
    %101 = vmatprep.subr.mxu0 0.0
    %102 = vmatpush2.msra.mxu0 0.0
    %103 = vmatprep.subr.mxu0 0.0
    %104 = vmatpush2.msra.mxu0 0.0
    %105 = vmatprep.subr.mxu0 0.0
    %106 = vmatpush2.msra.mxu0 0.0
    %107 = vmatprep.subr.mxu0 0.0
    %108 = vmatpush2.msra.mxu0 0.0
    %109 = vmatprep.subr.mxu0 0.0
    %110 = vmatpush2.msra.mxu0 0.0
    %111 = vmatprep.subr.mxu0 0.0
    %112 = vmatpush2.msra.mxu0 0.0
    %113 = vmatprep.subr.mxu0 0.0
    %114 = vmatpush2.msra.mxu0 0.0
    %115 = vmatprep.subr.mxu0 0.0
    %116 = vmatpush2.msra.mxu0 0.0
    %117 = vmatprep.subr.mxu0 0.0
    %118 = vmatpush2.msra.mxu0 0.0
    %119 = vmatprep.subr.mxu0 0.0
    %120 = vmatpush2.msra.mxu0 0.0
    %121 = vmatprep.subr.mxu0 0.0
    %122 = vmatpush2.msra.mxu0 0.0
    %123 = vmatprep.subr.mxu0 0.0
    %124 = vmatpush2.msra.mxu0 0.0
    %125 = vmatprep.subr.mxu0 0.0
    %126 = vmatpush2.msra.mxu0 0.0
    %127 = vmatprep.subr.mxu0 0.0
    %128 = vmatpush2.msra.mxu0 0.0
    %129 = vmatprep.subr.mxu0 0.0
    %130 = vmatpush2.msra.mxu0 0.0
    %131 = vmatprep.subr.mxu0 0.0
    %132 = vmatpush2.msra.mxu0 0.0
    %133 = vmatprep.mubr.f32.mxu0 0.0
    %134 = vmatmul.mubr.f32.gmra.mxu0 %v48
    %v135 = vpop.f32.mrf.mxu0
    %v136 = vadd.f32 %v68, %v135
    %v137 = vpop.f32.mrf.mxu0
    %138 = vdwg.mxu0
    %v139 = vmax.f32 %v136, 0.0
    %v140 = vld [vmem:[%s3] sm:$0xff]
    %v141 = vld [vmem:[%s3 + $0x8] sm:$0xff]
    %v142 = vld [vmem:[%s3 + $0x10] sm:$0xff]
    %v143 = vld [vmem:[%s3 + $0x18] sm:$0xff]
    %v144 = vld [vmem:[%s3 + $0x20] sm:$0xff]
    %v145 = vld [vmem:[%s3 + $0x28] sm:$0xff]
    %v146 = vld [vmem:[%s3 + $0x30] sm:$0xff]
    %v147 = vld [vmem:[%s3 + $0x38] sm:$0xff]
    %v148 = vld [vmem:[%s4] sm:$0x1]
    %v150 = vlaneseq
    %v151 = vshrl.u32 %v150, 7
    %v152 = vsub.s32 0, %v151
    %v153 = vrot.slane %v148, %v152
    %vm155 = vcmask 523264
    %v157 = vsel %vm155, %v139, 0
    %159 = vmatprep.subr.mxu0 0.0
    %160 = vmatpush1.msra.mxu0 0.0
    %161 = vmatprep.subr.mxu0 0.0
    %162 = vmatpush1.msra.mxu0 0.0
    %163 = vmatprep.subr.mxu0 0.0
    %164 = vmatpush1.msra.mxu0 0.0
    %165 = vmatprep.subr.mxu0 0.0
    %166 = vmatpush1.msra.mxu0 0.0
    %167 = vmatprep.subr.mxu0 0.0
    %168 = vmatpush1.msra.mxu0 0.0
    %169 = vmatprep.subr.mxu0 0.0
    %170 = vmatpush1.msra.mxu0 0.0
    %171 = vmatprep.subr.mxu0 0.0
    %172 = vmatpush1.msra.mxu0 0.0
    %173 = vmatprep.subr.mxu0 0.0
    %174 = vmatpush1.msra.mxu0 0.0
    %175 = vmatprep.subr.mxu0 0.0
    %176 = vmatpush1.msra.mxu0 %v147
    %177 = vmatprep.subr.mxu0 0.0
    %178 = vmatpush1.msra.mxu0 %v146
    %179 = vmatprep.subr.mxu0 0.0
    %180 = vmatpush1.msra.mxu0 %v145
    %181 = vmatprep.subr.mxu0 0.0
    %182 = vmatpush1.msra.mxu0 %v144
    %183 = vmatprep.subr.mxu0 0.0
    %184 = vmatpush1.msra.mxu0 %v143
    %185 = vmatprep.subr.mxu0 0.0
    %186 = vmatpush1.msra.mxu0 %v142
    %187 = vmatprep.subr.mxu0 0.0
    %188 = vmatpush1.msra.mxu0 %v141
    %189 = vmatprep.subr.mxu0 0.0
    %190 = vmatpush1.msra.mxu0 %v140
    %191 = vmatprep.subr.mxu0 0.0
    %192 = vmatpush2.msra.mxu0 0.0
    %193 = vmatprep.subr.mxu0 0.0
    %194 = vmatpush2.msra.mxu0 0.0
    %195 = vmatprep.subr.mxu0 0.0
    %196 = vmatpush2.msra.mxu0 0.0
    %197 = vmatprep.subr.mxu0 0.0
    %198 = vmatpush2.msra.mxu0 0.0
    %199 = vmatprep.subr.mxu0 0.0
    %200 = vmatpush2.msra.mxu0 0.0
    %201 = vmatprep.subr.mxu0 0.0
    %202 = vmatpush2.msra.mxu0 0.0
    %203 = vmatprep.subr.mxu0 0.0
    %204 = vmatpush2.msra.mxu0 0.0
    %205 = vmatprep.subr.mxu0 0.0
    %206 = vmatpush2.msra.mxu0 0.0
    %207 = vmatprep.subr.mxu0 0.0
    %208 = vmatpush2.msra.mxu0 0.0
    %209 = vmatprep.subr.mxu0 0.0
    %210 = vmatpush2.msra.mxu0 0.0
    %211 = vmatprep.subr.mxu0 0.0
    %212 = vmatpush2.msra.mxu0 0.0
    %213 = vmatprep.subr.mxu0 0.0
    %214 = vmatpush2.msra.mxu0 0.0
    %215 = vmatprep.subr.mxu0 0.0
    %216 = vmatpush2.msra.mxu0 0.0
    %217 = vmatprep.subr.mxu0 0.0
    %218 = vmatpush2.msra.mxu0 0.0
    %219 = vmatprep.subr.mxu0 0.0
    %220 = vmatpush2.msra.mxu0 0.0
    %221 = vmatprep.subr.mxu0 0.0
    %222 = vmatpush2.msra.mxu0 0.0
    %223 = vmatprep.mubr.f32.mxu0 0.0
    %224 = vmatmul.mubr.f32.gmra.mxu0 %v157
    %v225 = vpop.f32.mrf.mxu0
    %v226 = vadd.f32 %v153, %v225
    %v227 = vpop.f32.mrf.mxu0
    %228 = vdwg.mxu0
    %229 = vst [vmem:[#allocation2] sm:$0xff] %v226
    // Predicated region
    $region22: #{tpu_custom_call.1} parent=1 // pred_check
      _
    $region23: #{tpu_custom_call.1} parent=1 // pred_check_branch
      %231 = sbr.rel (0) target = $region25
    $region24: #{tpu_custom_call.1} parent=1 // pred_region
      %s233 = ssub.s32 128, 128
      %234 = vsyncadd [#allocation3], %s233
      %s236 = sshll.u32 [#allocation2], 4
      %s237 = int_to_ptr.vmem [resolvable:$true] %s236
      %239 = dma.vmem_to_hbm [thread:$0]  %s237, 128, %s5, [#allocation3]
    $region25: #{tpu_custom_call.1} parent=1 // pred_fallthru
      _
    // Predicated region
    $region26: #{tpu_custom_call.1} parent=1 // pred_check
      _
    $region27: #{tpu_custom_call.1} parent=1 // pred_check_branch
      %241 = sbr.rel (0) target = $region29
    $region28: #{tpu_custom_call.1} parent=1 // pred_region
      %242 = dma.done [#allocation3], 128
    $region29: #{tpu_custom_call.1} parent=1 // pred_fallthru
      _
    %243 = vsyncpa [#allocation3], 1

</llo_original>
